<compile_context>
chip_gen: v6e
topology: v6e:2x2x1
jax: 0.10.0
libtpu: 0.0.40
codegen_flags: <defaults>
</compile_context>

<pallas_src>
import functools
import math

import numpy as np
import jax
import jax.numpy as jnp
from jax.experimental import pallas as pl
from jax.experimental.pallas import tpu as pltpu


# ----------------------------- small helpers --------------------------------

def _to_2tuple(v):
    if isinstance(v, (tuple, list)):
        assert len(v) == 2
        return tuple(v)
    return (v, v)


def _pad_same_amount(x: int, kernel_size: int, stride: int, dilation: int = 1) -> int:
    return max((math.ceil(x / stride) - 1) * stride
               + (kernel_size - 1) * dilation + 1 - x, 0)


def _round_up(a: int, m: int) -> int:
    return ((a + m - 1) // m) * m


def _identity(x):
    return x


_ACTIVATIONS = {
    None: _identity,
    "identity": _identity,
    "none": _identity,
    "linear": _identity,
    "relu": jax.nn.relu,
    "relu6": jax.nn.relu6,
    "gelu": jax.nn.gelu,
    "silu": jax.nn.silu,
    "swish": jax.nn.silu,
    "sigmoid": jax.nn.sigmoid,
    "tanh": jnp.tanh,
}


def get_activation(spec):
    """Map an activation spec (None / name / callable) to a jnp-traceable callable."""
    if callable(spec):
        return spec
    key = spec.lower() if isinstance(spec, str) else spec
    if key not in _ACTIVATIONS:
        raise ValueError(f"unsupported activation spec: {spec!r}")
    return _ACTIVATIONS[key]


def _pool_mask_np(out_size: int, in_size: int, k: int, s: int, pad_before: int):
    """(out_size, in_size) 0/1 window mask with SAME padding folded in (clipped)."""
    o = np.arange(out_size)[:, None]
    i = np.arange(in_size)[None, :]
    start = o * s - pad_before
    return ((i >= start) & (i < start + k)).astype(np.float32)


# --------------------- generation-aware hardware limits ----------------------

def _sublane(dtype) -> int:
    # sublane tile rows for a dtype: f32 -> 8, bf16 -> 16, int8/fp8 -> 32
    return max(8, 32 // jnp.dtype(dtype).itemsize)


def _lane_bytes(n: int, dtype) -> int:
    return _round_up(max(int(n), 1), 128) * jnp.dtype(dtype).itemsize


def _plane_bytes(rows: int, cols: int, dtype) -> int:
    return _round_up(max(int(rows), 1), _sublane(dtype)) * _lane_bytes(cols, dtype)


_VMEM_HEADROOM = 4 << 20


@functools.lru_cache(maxsize=1)
def _chip_caps():
    """Return (vmem_limit_bytes, flat_hwo_cap) for the attached TPU generation."""
    phys = None
    try:
        info = pltpu.get_tpu_info()
        phys = getattr(info, "vmem_capacity_bytes", None) or getattr(info, "vmem_bytes", None)
        phys = int(phys) if phys else None
    except Exception:
        phys = None
    kind = ""
    try:
        kind = jax.devices()[0].device_kind.lower()
    except Exception:
        pass
    if phys is None:
        if any(t in kind for t in ("v4", "v5", "v6")):
            phys = 128 << 20
        elif any(t in kind for t in ("v2", "v3")):
            phys = 16 << 20
        else:
            phys = 64 << 20                      # v7x / unknown: 64 MiB per TensorCore
    if "v7" in kind:
        phys = min(phys, 64 << 20)               # never plan above v7x's per-TC VMEM
    vmem_limit = max(min(phys * 3 // 4, 96 << 20), 12 << 20)
    # The flat path performs ~HWo MACs per loaded element; cap HWo near the chip's
    # flops/byte balance point so the flat path stays memory-bound.
    if "v6" in kind:
        hwo_cap = 640
    elif "v7" in kind:
        hwo_cap = 320
    else:                                         # v5e / v4 / unknown: conservative
        hwo_cap = 256
    return int(vmem_limit), int(hwo_cap)


def _pick_channel_block(nc: int, per_c_bytes: int, budget_bytes: int, sub: int) -> int:
    """Largest channel block that fits the VMEM budget, rounded to the sublane tile,
    but capped so the grid keeps >=2 (ideally >=4) steps when NC allows (megacore
    sharding on v7x + DMA/compute double-buffer overlap)."""
    blk = max(int(budget_bytes) // max(int(per_c_bytes), 1), 1)
    blk = min(blk, 4096)
    if nc >= 4 * sub:
        blk = min(blk, _round_up(pl.cdiv(nc, 4), sub))
    elif nc >= 2 * sub:
        blk = min(blk, _round_up(pl.cdiv(nc, 2), sub))
    if blk >= sub:
        blk = (blk // sub) * sub
    return max(1, min(blk, nc))


# ------------------------------- kernels -------------------------------------

def _pool_flat_kernel(x_ref, p_ref, o_ref, *, inv_scale, act, compute_dtype):
    # x_ref: (C_blk, H*W); p_ref: (H*W, Ho*Wo) 0/1 pooling matrix; lane-dense matmul.
    xv = x_ref[...]
    if xv.dtype != compute_dtype:
        xv = xv.astype(compute_dtype)            # in-kernel cast: VPU work hidden by DMA
    acc = jnp.dot(xv, p_ref[...], preferred_element_type=jnp.float32)
    o_ref[...] = act(acc * inv_scale).astype(o_ref.dtype)


def _pool_sep_kernel(x_ref, mh_ref, mwt_ref, o_ref, t_ref, *, inv_scale, act,
                     compute_dtype, batched_stage1):
    # x_ref: (C_blk, H, W); mh_ref: (Ho, H); mwt_ref: (W, Wo) — exact 0/1 masks in
    # compute dtype, so both matmuls run natively (bf16 stays bf16) with f32 accum.
    c_blk, h, w = x_ref.shape
    wo = mwt_ref.shape[1]
    mh = mh_ref[...]
    mwt = mwt_ref[...]

    if batched_stage1:
        # Stage 1 (batched over channels): ONE large MXU matmul (c_blk*H, W) @ (W, Wo).
        xv = x_ref[...]
        if xv.dtype != compute_dtype:
            xv = xv.astype(compute_dtype)
        t = jnp.dot(xv.reshape(c_blk * h, w), mwt, preferred_element_type=jnp.float32)
        t_ref[...] = t.astype(compute_dtype).reshape(c_blk, h, wo)

        # Stage 2: per-channel Ho contraction with fused scale + activation epilogue.
        # TODO(synk): o_ref[c] stores are Wo-lane masked when Wo < 128; a lane-dense
        # flattened (NC, Ho*Wo) output would need an in-kernel (Ho,Wo)->(Ho*Wo,) relayout.
        def body(c, carry):
            s = jnp.dot(mh, t_ref[c], preferred_element_type=jnp.float32)
            o_ref[c] = act(s * inv_scale).astype(o_ref.dtype)
            return carry
    else:
        # Fallback (H not a sublane-tile multiple): per-channel two-matmul loop.
        def body(c, carry):
            xc = x_ref[c]
            if xc.dtype != compute_dtype:
                xc = xc.astype(compute_dtype)
            tc = jnp.dot(xc, mwt, preferred_element_type=jnp.float32).astype(compute_dtype)
            s = jnp.dot(mh, tc, preferred_element_type=jnp.float32)
            o_ref[c] = act(s * inv_scale).astype(o_ref.dtype)
            return carry

    jax.lax.fori_loop(0, c_blk, body, 0)


# --------------------------- wrapper / dispatch -------------------------------

def avg_pool2d_same(x, kernel_size, stride=None, ceil_mode: bool = False,
                    count_include_pad: bool = True, act=None,
                    force_separable: bool = False):
    # TODO(synk): ceil_mode=True with zero SAME padding and (H_padded - k) % s != 0 can
    # add one extra output row/col in PyTorch; floor-mode on the SAME-padded size is used.
    act = get_activation(act)
    kh, kw = _to_2tuple(kernel_size)
    sh, sw = _to_2tuple(stride) if stride is not None else (kh, kw)

    N, C, H, W = x.shape
    pad_h = _pad_same_amount(H, kh, sh)
    pad_w = _pad_same_amount(W, kw, sw)
    Ho = (H + pad_h - kh) // sh + 1
    Wo = (W + pad_w - kw) // sw + 1
    inv_scale = 1.0 / float(kh * kw)   # explicit avg_pool2d padding is 0 -> divisor kh*kw

    out_dtype = x.dtype
    compute_dtype = x.dtype if x.dtype in (jnp.bfloat16, jnp.float32) else jnp.float32
    x_item = jnp.dtype(x.dtype).itemsize
    c_item = jnp.dtype(compute_dtype).itemsize
    o_item = jnp.dtype(out_dtype).itemsize

    # SAME padding folded into 0/1 pooling masks (windows clipped to the valid range).
    mh = _pool_mask_np(Ho, H, kh, sh, pad_h // 2)    # (Ho, H)
    mw = _pool_mask_np(Wo, W, kw, sw, pad_w // 2)    # (Wo, W)

    NC, HW, HWo = N * C, H * W, Ho * Wo
    vmem_limit, hwo_cap = _chip_caps()
    sub = max(_sublane(x.dtype), _sublane(out_dtype))
    act_is_identity = act is _identity
    cparams = pltpu.CompilerParams(dimension_semantics=("parallel",),
                                   vmem_limit_bytes=vmem_limit)

    p_bytes = _plane_bytes(HW, HWo, compute_dtype)
    flat_p_cap = min(8 << 20, vmem_limit // 8)
    use_flat = ((not force_separable) and (HWo <= hwo_cap) and (p_bytes <= flat_p_cap))

    if use_flat:
        # Lane-dense single-matmul path: out(NC, Ho*Wo) = x(NC, H*W) @ P(H*W, Ho*Wo).
        p4 = mh.T[:, None, :, None] * mw.T[None, :, None, :]     # (H, W, Ho, Wo), 0/1
        p = jnp.asarray(p4.reshape(HW, HWo), dtype=compute_dtype)
        x2 = x.reshape(NC, HW)                                    # free reshape, no astype

        per_c = (2 * _lane_bytes(HW, x.dtype)        # double-buffered input rows
                 + 2 * _lane_bytes(HWo, out_dtype)   # double-buffered output rows
                 + _lane_bytes(HWo, jnp.float32))    # f32 matmul accumulator
        if x.dtype != compute_dtype:
            per_c += _lane_bytes(HW, compute_dtype)  # in-kernel cast temporary
        budget = vmem_limit - 2 * p_bytes - _VMEM_HEADROOM
        c_blk = _pick_channel_block(NC, per_c, budget, sub)
        grid = (pl.cdiv(NC, c_blk),)
        cost = pl.CostEstimate(
            flops=2 * NC * HW * HWo,
            transcendentals=0 if act_is_identity else NC * HWo,
            bytes_accessed=NC * HW * x_item + HW * HWo * c_item + NC * HWo * o_item)
        out2 = pl.pallas_call(
            functools.partial(_pool_flat_kernel, inv_scale=inv_scale, act=act,
                              compute_dtype=compute_dtype),
            out_shape=jax.ShapeDtypeStruct((NC, HWo), out_dtype),
            grid=grid,
            in_specs=[pl.BlockSpec((c_blk, HW), lambda i: (i, 0)),
                      pl.BlockSpec((HW, HWo), lambda i: (0, 0))],
            out_specs=pl.BlockSpec((c_blk, HWo), lambda i: (i, 0)),
            compiler_params=cparams,
            cost_estimate=cost,
        )(x2, p)
        return out2.reshape(N, C, Ho, Wo)

    # Separable path (large spatial maps): per block, one batched W-contraction matmul
    # into VMEM scratch, then per-channel Ho-contraction with fused epilogue.
    mh_j = jnp.asarray(mh, dtype=compute_dtype)      # (Ho, H)
    mwt_j = jnp.asarray(mw.T, dtype=compute_dtype)   # (W, Wo)
    x3 = x.reshape(NC, H, W)                          # free reshape, no astype
    batched_stage1 = (H % _sublane(compute_dtype) == 0)

    per_c = (2 * _plane_bytes(H, W, x.dtype)          # double-buffered input block
             + 2 * _plane_bytes(Ho, Wo, out_dtype)    # double-buffered output block
             + _plane_bytes(H, Wo, compute_dtype)     # stage-1 scratch (compute dtype)
             + _plane_bytes(H, Wo, jnp.float32))      # stage-1 f32 result temporary
    mask_bytes = 2 * (_plane_bytes(Ho, H, compute_dtype) + _plane_bytes(W, Wo, compute_dtype))
    budget = vmem_limit - mask_bytes - _VMEM_HEADROOM
    c_blk = _pick_channel_block(NC, per_c, budget, sub)
    grid = (pl.cdiv(NC, c_blk),)
    cost = pl.CostEstimate(
        flops=2 * NC * (H * W * Wo + Ho * H * Wo),
        transcendentals=0 if act_is_identity else NC * HWo,
        bytes_accessed=NC * HW * x_item + (Ho * H + W * Wo) * c_item + NC * HWo * o_item)
    out3 = pl.pallas_call(
        functools.partial(_pool_sep_kernel, inv_scale=inv_scale, act=act,
                          compute_dtype=compute_dtype, batched_stage1=batched_stage1),
        out_shape=jax.ShapeDtypeStruct((NC, Ho, Wo), out_dtype),
        grid=grid,
        in_specs=[pl.BlockSpec((c_blk, H, W), lambda i: (i, 0, 0)),
                  pl.BlockSpec((Ho, H), lambda i: (0, 0)),
                  pl.BlockSpec((W, Wo), lambda i: (0, 0))],
        out_specs=pl.BlockSpec((c_blk, Ho, Wo), lambda i: (i, 0, 0)),
        scratch_shapes=[pltpu.VMEM((c_blk, H, Wo), compute_dtype)],
        compiler_params=cparams,
        cost_estimate=cost,
    )(x3, mh_j, mwt_j)
    return out3.reshape(N, C, Ho, Wo)


class AvgPool2dSame:
    """TensorFlow-like 'SAME' wrapper for 2D average pooling (Pallas TPU)."""

    def __init__(self, kernel_size, stride=None, ceil_mode=False, count_include_pad=True):
        self.kernel_size = _to_2tuple(kernel_size)
        self.stride = _to_2tuple(stride) if stride is not None else self.kernel_size
        self.ceil_mode = ceil_mode
        self.count_include_pad = count_include_pad

    def __call__(self, x, act=None, force_separable=False):
        return avg_pool2d_same(x, self.kernel_size, self.stride, self.ceil_mode,
                               self.count_include_pad, act=act,
                               force_separable=force_separable)


class ActivationWrapper:
    """forward(x) = act(wrap(x)).  When the wrapped module is the Pallas
    AvgPool2dSame, the activation is fused into the kernel epilogue."""

    def __init__(self, mod, activation):
        self.wrap = mod
        self.act = get_activation(activation)

    def __call__(self, x):
        if isinstance(self.wrap, AvgPool2dSame):
            return self.wrap(x, act=self.act)   # fused inside the Pallas kernel
        return self.act(self.wrap(x))


# ------------------------------ reference ------------------------------------

def _reference_avg_pool2d_same(x, kernel_size, stride):
    """Pure-JAX reference (reduce_window, f32) for correctness checking."""
    kh, kw = kernel_size
    sh, sw = stride
    pad_h = _pad_same_amount(x.shape[2], kh, sh)
    pad_w = _pad_same_amount(x.shape[3], kw, sw)
    xp = jnp.pad(x.astype(jnp.float32),
                 ((0, 0), (0, 0),
                  (pad_h // 2, pad_h - pad_h // 2),
                  (pad_w // 2, pad_w - pad_w // 2)))
    s = jax.lax.reduce_window(xp, 0.0, jax.lax.add,
                              (1, 1, kh, kw), (1, 1, sh, sw), "VALID")
    return s / float(kh * kw)


if __name__ == "__main__":
    key = jax.random.PRNGKey(0)
    x = jax.random.normal(key, (2, 4, 16, 16), dtype=jnp.float32)

    pool = AvgPool2dSame(kernel_size=3, stride=2)
    ref = _reference_avg_pool2d_same(x, pool.kernel_size, pool.stride)

    # 1) Lane-dense flattened-spatial path, identity activation.
    out = jax.block_until_ready(ActivationWrapper(pool, "identity")(x))
    assert out.shape == ref.shape, (out.shape, ref.shape)
    assert jnp.allclose(out, ref, atol=1e-4, rtol=1e-4)

    # 2) Fused ReLU epilogue (ActivationWrapper semantics: act(wrap(x))).
    out_relu = jax.block_until_ready(ActivationWrapper(pool, "relu")(x))
    assert jnp.allclose(out_relu, jnp.maximum(ref, 0.0), atol=1e-4, rtol=1e-4)

    # 3) Channel-blocked separable fallback, forced on the small map.
    out_sep = jax.block_until_ready(pool(x, force_separable=True))
    assert jnp.allclose(out_sep, ref, atol=1e-4, rtol=1e-4)

    # 4) Separable path chosen automatically for a larger spatial map
    #    (exercises the batched stage-1 matmul + scratch).
    x_big = jax.random.normal(jax.random.PRNGKey(1), (1, 8, 64, 64), dtype=jnp.float32)
    ref_big = _reference_avg_pool2d_same(x_big, pool.kernel_size, pool.stride)
    out_big = jax.block_until_ready(pool(x_big))
    assert out_big.shape == ref_big.shape
    assert jnp.allclose(out_big, ref_big, atol=1e-4, rtol=1e-4)

    # 5) bf16 input stays bf16 on the MXU (f32 accumulation), bf16 output.
    x_bf = x.astype(jnp.bfloat16)
    out_bf = jax.block_until_ready(pool(x_bf))
    ref_bf = _reference_avg_pool2d_same(x_bf.astype(jnp.float32),
                                        pool.kernel_size, pool.stride)
    assert out_bf.dtype == jnp.bfloat16
    assert jnp.allclose(out_bf.astype(jnp.float32), ref_bf, atol=2e-2, rtol=2e-2)

    print("KERNEL_OK")
</pallas_src>

<mosaic_0001>
module attributes {stable_mosaic.version = 11 : i64} {
  func.func @_pool_flat_kernel(%arg0: i32, %arg1: memref<8x256xf32, #tpu.memory_space<vmem>>, %arg2: memref<256x64xf32, #tpu.memory_space<vmem>>, %arg3: memref<8x64xf32, #tpu.memory_space<vmem>>) attributes {dimension_semantics = [#tpu.dimension_semantics<parallel>], iteration_bounds = array<i64: 1>, scalar_prefetch = 0 : i64, scratch_operands = 0 : i64, tpu.core_type = #tpu.core_type<tc>, window_params = [{transform_indices = @transform_0, window_bounds = array<i64: 8, 256>}, {pipeline_mode = #tpu.pipeline_mode<synchronous>, transform_indices = @transform_1, window_bounds = array<i64: 256, 64>}, {transform_indices = @transform_2, window_bounds = array<i64: 8, 64>}]} {
    %c0 = arith.constant 0 : index
    %c0_0 = arith.constant 0 : index
    %0 = vector.load %arg1[%c0, %c0_0] : memref<8x256xf32, #tpu.memory_space<vmem>>, vector<8x256xf32>
    %c0_1 = arith.constant 0 : index
    %c0_2 = arith.constant 0 : index
    %1 = vector.load %arg2[%c0_1, %c0_2] : memref<256x64xf32, #tpu.memory_space<vmem>>, vector<256x64xf32>
    %cst = arith.constant dense<0.000000e+00> : vector<8x64xf32>
    %2 = tpu.matmul %0, %1, %cst {dimension_numbers = #tpu.dot_dimension_numbers<[1], [0], [0], [1], [0, 0, 1, 1], [], []>} : vector<8x256xf32>, vector<256x64xf32>, vector<8x64xf32> -> vector<8x64xf32>
    %cst_3 = arith.constant 0.111111112 : f32
    %3 = vector.broadcast %cst_3 : f32 to vector<8x64xf32>
    %4 = arith.mulf %2, %3 : vector<8x64xf32>
    %c0_4 = arith.constant 0 : index
    %c0_5 = arith.constant 0 : index
    %5 = vector.load %arg3[%c0_4, %c0_5] : memref<8x64xf32, #tpu.memory_space<vmem>>, vector<8x64xf32>
    tpu.vector_store %arg3[%c0_4, %c0_5], %4 {strides = array<i32>} : memref<8x64xf32, #tpu.memory_space<vmem>>, vector<8x64xf32>,
    return
  }
  func.func @transform_0(%arg0: i32) -> (i32, i32) {
    %c0_i32 = arith.constant 0 : i32
    %c0_i32_0 = arith.constant 0 : i32
    return %arg0, %c0_i32 : i32, i32
  }
  func.func @transform_1(%arg0: i32) -> (i32, i32) {
    %c0_i32 = arith.constant 0 : i32
    %c0_i32_0 = arith.constant 0 : i32
    %c0_i32_1 = arith.constant 0 : i32
    return %c0_i32, %c0_i32_0 : i32, i32
  }
  func.func @transform_2(%arg0: i32) -> (i32, i32) {
    %c0_i32 = arith.constant 0 : i32
    %c0_i32_0 = arith.constant 0 : i32
    return %arg0, %c0_i32 : i32, i32
  }
}

</mosaic_0001>

<llo_original>
// kernel: tpu_custom_call.1
$region0: #{tpu_custom_call.1}
  #allocation0 [shape = 'u32[]', space=smem, size = 0x4, offset = 0x4, fixed_abs, tag = 'smem constant byte address 0x4 - core index']
  #allocation1 [shape = 'u32[144,128]{1,0:T(1,128)}', space=vmem, size = 0x12000, scoped, tag = 'internal scratch']
  %s0 = inlined_call_operand.vmem [shape: f32[8,256], index: 0, kind: input, shape index: {}]
  %s1 = inlined_call_operand.vmem [shape: f32[256,64], index: 1, kind: input, shape index: {}]
  %s2 = inlined_call_operand.hbm [shape: f32[8,64], index: 2, kind: output, shape index: {}]
  %s3 = sld [smem:[#allocation0]]
  $region18: #{tpu_custom_call.1} parent=0
    _
  %s5 = ssub.s32 1, %s3
  %s6 = scalar_select 0, %s5, %s3
  $region1: #{tpu_custom_call.1} parent=0
    #allocation2 [shape = 'u8[4096]{0}', space=vmem, size = 0x1000, scoped, tag = 'output window, operand 0, single buffered']
    #allocation3 [shape = 's32[1]{0}', space=sflag, size = 0x4, scoped, tag = 'scoped memory for tpu_custom_call.1']
    %7 = vsyncpa [#allocation3], 0
    // Predicated region
    $region2: #{tpu_custom_call.1} parent=1 // pred_check
      _
    $region3: #{tpu_custom_call.1} parent=1 // pred_check_branch
      %9 = sbr.rel (0) target = $region5
    $region4: #{tpu_custom_call.1} parent=1 // pred_region
      _
    $region5: #{tpu_custom_call.1} parent=1 // pred_fallthru
      _
    // Predicated region
    $region6: #{tpu_custom_call.1} parent=1 // pred_check
      _
    $region7: #{tpu_custom_call.1} parent=1 // pred_check_branch
      %11 = sbr.rel (0) target = $region9
    $region8: #{tpu_custom_call.1} parent=1 // pred_region
      _
    $region9: #{tpu_custom_call.1} parent=1 // pred_fallthru
      _
    %v12 = vld [vmem:[%s0] sm:$0xff]
    %v13 = vld [vmem:[%s0 + $0x8] sm:$0xff]
    %v14 = vld [vmem:[%s1] sm:$0xff]
    %v15 = vld [vmem:[%s1 + $0x8] sm:$0xff]
    %v16 = vld [vmem:[%s1 + $0x10] sm:$0xff]
    %v17 = vld [vmem:[%s1 + $0x18] sm:$0xff]
    %v18 = vld [vmem:[%s1 + $0x20] sm:$0xff]
    %v19 = vld [vmem:[%s1 + $0x28] sm:$0xff]
    %v20 = vld [vmem:[%s1 + $0x30] sm:$0xff]
    %v21 = vld [vmem:[%s1 + $0x38] sm:$0xff]
    %v22 = vld [vmem:[%s1 + $0x40] sm:$0xff]
    %v23 = vld [vmem:[%s1 + $0x48] sm:$0xff]
    %v24 = vld [vmem:[%s1 + $0x50] sm:$0xff]
    %v25 = vld [vmem:[%s1 + $0x58] sm:$0xff]
    %v26 = vld [vmem:[%s1 + $0x60] sm:$0xff]
    %v27 = vld [vmem:[%s1 + $0x68] sm:$0xff]
    %v28 = vld [vmem:[%s1 + $0x70] sm:$0xff]
    %v29 = vld [vmem:[%s1 + $0x78] sm:$0xff]
    %v30 = vld [vmem:[%s1 + $0x80] sm:$0xff]
    %v31 = vld [vmem:[%s1 + $0x88] sm:$0xff]
    %v32 = vld [vmem:[%s1 + $0x90] sm:$0xff]
    %v33 = vld [vmem:[%s1 + $0x98] sm:$0xff]
    %v34 = vld [vmem:[%s1 + $0xa0] sm:$0xff]
    %v35 = vld [vmem:[%s1 + $0xa8] sm:$0xff]
    %v36 = vld [vmem:[%s1 + $0xb0] sm:$0xff]
    %v37 = vld [vmem:[%s1 + $0xb8] sm:$0xff]
    %v38 = vld [vmem:[%s1 + $0xc0] sm:$0xff]
    %v39 = vld [vmem:[%s1 + $0xc8] sm:$0xff]
    %v40 = vld [vmem:[%s1 + $0xd0] sm:$0xff]
    %v41 = vld [vmem:[%s1 + $0xd8] sm:$0xff]
    %v42 = vld [vmem:[%s1 + $0xe0] sm:$0xff]
    %v43 = vld [vmem:[%s1 + $0xe8] sm:$0xff]
    %v44 = vld [vmem:[%s1 + $0xf0] sm:$0xff]
    %v45 = vld [vmem:[%s1 + $0xf8] sm:$0xff]
    %46 = vmatprep.subr.mxu0 0.0
    %47 = vmatpush1.msra.mxu0 %v29
    %48 = vmatprep.subr.mxu0 0.0
    %49 = vmatpush1.msra.mxu0 %v28
    %50 = vmatprep.subr.mxu0 0.0
    %51 = vmatpush1.msra.mxu0 %v27
    %52 = vmatprep.subr.mxu0 0.0
    %53 = vmatpush1.msra.mxu0 %v26
    %54 = vmatprep.subr.mxu0 0.0
    %55 = vmatpush1.msra.mxu0 %v25
    %56 = vmatprep.subr.mxu0 0.0
    %57 = vmatpush1.msra.mxu0 %v24
    %58 = vmatprep.subr.mxu0 0.0
    %59 = vmatpush1.msra.mxu0 %v23
    %60 = vmatprep.subr.mxu0 0.0
    %61 = vmatpush1.msra.mxu0 %v22
    %62 = vmatprep.subr.mxu0 0.0
    %63 = vmatpush1.msra.mxu0 %v21
    %64 = vmatprep.subr.mxu0 0.0
    %65 = vmatpush1.msra.mxu0 %v20
    %66 = vmatprep.subr.mxu0 0.0
    %67 = vmatpush1.msra.mxu0 %v19
    %68 = vmatprep.subr.mxu0 0.0
    %69 = vmatpush1.msra.mxu0 %v18
    %70 = vmatprep.subr.mxu0 0.0
    %71 = vmatpush1.msra.mxu0 %v17
    %72 = vmatprep.subr.mxu0 0.0
    %73 = vmatpush1.msra.mxu0 %v16
    %74 = vmatprep.subr.mxu0 0.0
    %75 = vmatpush1.msra.mxu0 %v15
    %76 = vmatprep.subr.mxu0 0.0
    %77 = vmatpush1.msra.mxu0 %v14
    %78 = vmatprep.subr.mxu0 0.0
    %79 = vmatpush2.msra.mxu0 %v45
    %80 = vmatprep.subr.mxu0 0.0
    %81 = vmatpush2.msra.mxu0 %v44
    %82 = vmatprep.subr.mxu0 0.0
    %83 = vmatpush2.msra.mxu0 %v43
    %84 = vmatprep.subr.mxu0 0.0
    %85 = vmatpush2.msra.mxu0 %v42
    %86 = vmatprep.subr.mxu0 0.0
    %87 = vmatpush2.msra.mxu0 %v41
    %88 = vmatprep.subr.mxu0 0.0
    %89 = vmatpush2.msra.mxu0 %v40
    %90 = vmatprep.subr.mxu0 0.0
    %91 = vmatpush2.msra.mxu0 %v39
    %92 = vmatprep.subr.mxu0 0.0
    %93 = vmatpush2.msra.mxu0 %v38
    %94 = vmatprep.subr.mxu0 0.0
    %95 = vmatpush2.msra.mxu0 %v37
    %96 = vmatprep.subr.mxu0 0.0
    %97 = vmatpush2.msra.mxu0 %v36
    %98 = vmatprep.subr.mxu0 0.0
    %99 = vmatpush2.msra.mxu0 %v35
    %100 = vmatprep.subr.mxu0 0.0
    %101 = vmatpush2.msra.mxu0 %v34
    %102 = vmatprep.subr.mxu0 0.0
    %103 = vmatpush2.msra.mxu0 %v33
    %104 = vmatprep.subr.mxu0 0.0
    %105 = vmatpush2.msra.mxu0 %v32
    %106 = vmatprep.subr.mxu0 0.0
    %107 = vmatpush2.msra.mxu0 %v31
    %108 = vmatprep.subr.mxu0 0.0
    %109 = vmatpush2.msra.mxu0 %v30
    %110 = vmatprep.mubr.f32.mxu0 %v13
    %111 = vmatmul.mubr.f32.gmra.mxu0 %v12
    %v112 = vpop.f32.mrf.mxu0
    %v113 = vadd.f32 0.0, %v112
    %v114 = vpop.f32.mrf.mxu0
    %115 = vdwg.mxu0
    %v116 = vmul.f32 %v113, 0.11111111
    %vm117 = vcmask 523264
    %118 = vst.msk [vmem:[#allocation2] sm:$0xff] %vm117, %v116
    // Predicated region
    $region10: #{tpu_custom_call.1} parent=1 // pred_check
      _
    $region11: #{tpu_custom_call.1} parent=1 // pred_check_branch
      %120 = sbr.rel (0) target = $region13
    $region12: #{tpu_custom_call.1} parent=1 // pred_region
      %s122 = ssub.s32 128, 128
      %123 = vsyncadd [#allocation3], %s122
      %s125 = sshll.u32 [#allocation2], 4
      %s126 = int_to_ptr.vmem [resolvable:$true] %s125
      %128 = dma.vmem_to_hbm [thread:$0]  %s126, 128, %s2, [#allocation3]
    $region13: #{tpu_custom_call.1} parent=1 // pred_fallthru
      _
    // Predicated region
    $region14: #{tpu_custom_call.1} parent=1 // pred_check
      _
    $region15: #{tpu_custom_call.1} parent=1 // pred_check_branch
      %130 = sbr.rel (0) target = $region17
    $region16: #{tpu_custom_call.1} parent=1 // pred_region
      %131 = dma.done [#allocation3], 128
    $region17: #{tpu_custom_call.1} parent=1 // pred_fallthru
      _
    %132 = vsyncpa [#allocation3], 1

</llo_original>
